<compile_context>
chip_gen: v5e
topology: v5e:2x2
jax: 0.10.0
libtpu: 0.0.40
codegen_flags: <defaults>
</compile_context>

<pallas_src>
import functools
import math

import jax
import jax.numpy as jnp
from jax import lax
from jax.experimental import pallas as pl
from jax.experimental.pallas import tpu as pltpu


def _mha_kernel(q_ref, k_ref, wq_ref, bq_ref, wkv_ref, bkv_ref,
                out_ref, attn_ref, kv_ref, kmask_ref,
                *, num_heads, head_dim, causality):
    q = q_ref[0]                            # (TQ, dim) — current query tile
    tq, dim = q.shape
    lk = kv_ref.shape[0]
    neg_inf = jnp.float32(-jnp.inf)

    # ---- K/V projection + key-padding mask: once per batch element ---------
    # Cached in VMEM scratch and reused across all query tiles (grid axis 1).
    @pl.when(pl.program_id(1) == 0)
    def _():
        k = k_ref[0]                        # (Lk, dim)
        kv_ref[...] = (jnp.dot(k, wkv_ref[...],
                               preferred_element_type=jnp.float32)
                       + bkv_ref[...])
        key_sum = jnp.sum(jnp.abs(k), axis=-1)                      # (Lk,)
        kmask_ref[...] = jnp.where(key_sum[None, :] == 0.0, neg_inf, 0.0)

    # ---- query projection ---------------------------------------------------
    # Scale 1/sqrt(head_dim) is pre-folded into wq_ref / bq_ref by the wrapper.
    Qp = jnp.dot(q, wq_ref[...], preferred_element_type=jnp.float32) + bq_ref[...]
    KV = kv_ref[...]                        # (Lk, 2*dim): [K_proj | V_proj]

    # ---- additive 0/-inf mask shared by all heads ---------------------------
    add_mask = kmask_ref[...]                                        # (1, Lk)
    if causality:
        q_start = pl.program_id(1) * tq
        row = lax.broadcasted_iota(jnp.int32, (tq, lk), 0) + q_start
        col = lax.broadcasted_iota(jnp.int32, (tq, lk), 1)
        add_mask = jnp.where(col > row, neg_inf, add_mask)           # (TQ, Lk)

    qry_mask = jnp.where(
        jnp.sum(jnp.abs(q), axis=-1, keepdims=True) == 0.0, 0.0, 1.0)  # (TQ, 1)

    # ---- per-head attention --------------------------------------------------
    ctx_parts = []
    for h in range(num_heads):
        lo, hi = h * head_dim, (h + 1) * head_dim
        Qh = Qp[:, lo:hi]
        Kh = KV[:, lo:hi]
        Vh = KV[:, dim + lo:dim + hi]

        # scores (scale already folded into Qh) + additive 0/-inf mask
        s = lax.dot_general(Qh, Kh, (((1,), (1,)), ((), ())),
                            preferred_element_type=jnp.float32) + add_mask

        # softmax(dim=-1) followed by nan_to_num(nan/±inf -> 0): fully-masked
        # rows come out exactly 0, matching the PyTorch semantics.
        m = jnp.max(s, axis=-1, keepdims=True)
        row_ok = m > neg_inf
        e = jnp.exp(s - jnp.where(row_ok, m, 0.0))
        denom = jnp.sum(e, axis=-1, keepdims=True)
        p = jnp.where(row_ok & (denom > 0.0),
                      e * pl.reciprocal(denom, approx=True), 0.0)

        # query padding mask (multiplicative)
        p = p * qry_mask

        # attention weights are returned *before* dropout, as in the reference.
        attn_ref[0, h] = p

        # TODO(synk): nn.Dropout(p=0.5) is identity here (eval-mode / deterministic kernel).
        ctx_parts.append(jnp.dot(p, Vh, preferred_element_type=jnp.float32))

    # Single lane-dense (TQ, dim) store instead of H strided head_dim-wide stores.
    out_ref[0] = jnp.concatenate(ctx_parts, axis=-1).astype(out_ref.dtype)


def multi_head_attention(queries, keys, params, num_heads, causality=False, tq=None):
    B, Lq, dim = queries.shape
    _, Lk, _ = keys.shape
    assert dim % num_heads == 0
    head_dim = dim // num_heads

    if tq is None:
        if Lq <= 128:
            tq = Lq
        else:
            tq = next((t for t in (128, 64, 32, 16, 8) if Lq % t == 0), Lq)
    assert Lq % tq == 0 and (tq % 8 == 0 or tq == Lq)
    n_q = Lq // tq

    wq, bq, wk, bk, wv, bv = params
    scale = 1.0 / math.sqrt(head_dim)
    # nn.Linear weight is (out, in): transpose so y = x @ W^T + b.  Fold the
    # score scale into the query projection, fuse K/V weights+biases into one slab.
    wq_t = wq.T * scale
    bq2 = (bq * scale)[None, :]
    wkv_t = jnp.concatenate([wk.T, wv.T], axis=1)         # (dim, 2*dim)
    bkv2 = jnp.concatenate([bk, bv])[None, :]             # (1, 2*dim)

    kernel = functools.partial(_mha_kernel, num_heads=num_heads,
                               head_dim=head_dim, causality=causality)

    out_shape = (
        jax.ShapeDtypeStruct((B, Lq, dim), jnp.float32),
        jax.ShapeDtypeStruct((B, num_heads, Lq, Lk), jnp.float32),
    )

    grid_spec = pltpu.PrefetchScalarGridSpec(
        num_scalar_prefetch=0,
        grid=(B, n_q),
        in_specs=[
            pl.BlockSpec((1, tq, dim), lambda b, qi: (b, qi, 0)),     # query tile
            pl.BlockSpec((1, Lk, dim), lambda b, qi: (b, 0, 0)),      # full keys
            pl.BlockSpec((dim, dim), lambda b, qi: (0, 0)),           # Wq^T (scaled)
            pl.BlockSpec((1, dim), lambda b, qi: (0, 0)),             # bq (scaled)
            pl.BlockSpec((dim, 2 * dim), lambda b, qi: (0, 0)),       # [Wk^T | Wv^T]
            pl.BlockSpec((1, 2 * dim), lambda b, qi: (0, 0)),         # [bk | bv]
        ],
        out_specs=[
            pl.BlockSpec((1, tq, dim), lambda b, qi: (b, qi, 0)),
            pl.BlockSpec((1, num_heads, tq, Lk), lambda b, qi: (b, 0, qi, 0)),
        ],
        scratch_shapes=[
            pltpu.VMEM((Lk, 2 * dim), jnp.float32),   # cached [K|V] projection
            pltpu.VMEM((1, Lk), jnp.float32),         # cached key 0/-inf mask
        ],
    )

    return pl.pallas_call(
        kernel,
        out_shape=out_shape,
        grid_spec=grid_spec,
        compiler_params=pltpu.CompilerParams(
            dimension_semantics=("parallel", "arbitrary")),
    )(queries, keys, wq_t, bq2, wkv_t, bkv2)


def reference_mha(queries, keys, params, num_heads, causality=False):
    """Pure-JAX transcription of the PyTorch forward (f32 HIGHEST) for verification."""
    HIGH = jax.lax.Precision.HIGHEST
    wq, bq, wk, bk, wv, bv = params
    B, Lq, dim = queries.shape
    Lk = keys.shape[1]
    d = dim // num_heads

    Q = jnp.einsum('bld,od->blo', queries, wq, precision=HIGH) + bq
    K = jnp.einsum('bld,od->blo', keys, wk, precision=HIGH) + bk
    V = jnp.einsum('bld,od->blo', keys, wv, precision=HIGH) + bv

    def split_heads(X):  # torch.cat(X.chunk(H, dim=2), dim=0)
        return jnp.concatenate([X[..., i * d:(i + 1) * d] for i in range(num_heads)], axis=0)

    Q_, K_, V_ = split_heads(Q), split_heads(K), split_heads(V)
    s = jnp.einsum('bqd,bkd->bqk', Q_, K_, precision=HIGH) / math.sqrt(d)

    key_mask = jnp.sign(jnp.sum(jnp.abs(keys), axis=-1))     # (B, Lk)
    key_mask = jnp.tile(key_mask, (num_heads, 1))            # (H*B, Lk)
    s = jnp.where(key_mask[:, None, :] == 0.0, -jnp.inf, s)

    if causality:
        tril = jnp.tril(jnp.ones((Lq, Lk), jnp.float32))
        s = jnp.where(tril[None] == 0.0, -jnp.inf, s)

    m = jnp.max(s, axis=-1, keepdims=True)
    e = jnp.exp(s - m)
    p = e / jnp.sum(e, axis=-1, keepdims=True)
    p = jnp.nan_to_num(p, nan=0.0, posinf=0.0, neginf=0.0)

    qm = jnp.sign(jnp.sum(jnp.abs(queries), axis=-1))        # (B, Lq)
    qm = jnp.tile(qm, (num_heads, 1))                        # (H*B, Lq)
    p = p * qm[:, :, None]

    attn = jnp.stack([p[i * B:(i + 1) * B] for i in range(num_heads)], axis=1)
    o = jnp.einsum('bqk,bkd->bqd', p, V_, precision=HIGH)
    o = jnp.concatenate([o[i * B:(i + 1) * B] for i in range(num_heads)], axis=2)
    return o, attn


if __name__ == "__main__":
    B, L, DIM, H, TQ = 2, 16, 32, 4, 8

    root = jax.random.PRNGKey(0)
    ks = jax.random.split(root, 8)
    bound = 1.0 / math.sqrt(DIM)

    wq = jax.random.uniform(ks[0], (DIM, DIM), jnp.float32, -bound, bound)
    bq = jax.random.uniform(ks[1], (DIM,), jnp.float32, -bound, bound)
    wk = jax.random.uniform(ks[2], (DIM, DIM), jnp.float32, -bound, bound)
    bk = jax.random.uniform(ks[3], (DIM,), jnp.float32, -bound, bound)
    wv = jax.random.uniform(ks[4], (DIM, DIM), jnp.float32, -bound, bound)
    bv = jax.random.uniform(ks[5], (DIM,), jnp.float32, -bound, bound)
    params = (wq, bq, wk, bk, wv, bv)

    queries = jax.random.normal(ks[6], (B, L, DIM), jnp.float32)
    keys_in = jax.random.normal(ks[7], (B, L, DIM), jnp.float32)
    # Zero a key position and a query position to exercise the padding masks.
    keys_in = keys_in.at[:, -1, :].set(0.0)
    queries = queries.at[0, 3, :].set(0.0)

    # Kernel uses DEFAULT (bf16-MXU) matmul precision; reference is f32 HIGHEST,
    # so the comparison tolerance is correspondingly loosened.
    ATOL = RTOL = 2e-2

    for causal in (False, True):
        out, attn = multi_head_attention(queries, keys_in, params, H,
                                         causality=causal, tq=TQ)
        out = jax.block_until_ready(out)
        attn = jax.block_until_ready(attn)

        ref_out, ref_attn = reference_mha(queries, keys_in, params, H, causality=causal)
        ref_out = jax.block_until_ready(ref_out)

        assert out.shape == (B, L, DIM) and attn.shape == (B, H, L, L)
        assert jnp.allclose(out, ref_out, atol=ATOL, rtol=RTOL), \
            f"output mismatch (causal={causal})"
        assert jnp.allclose(attn, ref_attn, atol=ATOL, rtol=RTOL), \
            f"attention mismatch (causal={causal})"

    print("KERNEL_OK")
</pallas_src>

<mosaic_0001>
module attributes {stable_mosaic.version = 11 : i64} {
  func.func @_mha_kernel(%arg0: i32, %arg1: i32, %arg2: memref<1x8x32xf32, #tpu.memory_space<vmem>>, %arg3: memref<1x16x32xf32, #tpu.memory_space<vmem>>, %arg4: memref<32x32xf32, #tpu.memory_space<vmem>>, %arg5: memref<1x32xf32, #tpu.memory_space<vmem>>, %arg6: memref<32x64xf32, #tpu.memory_space<vmem>>, %arg7: memref<1x64xf32, #tpu.memory_space<vmem>>, %arg8: memref<1x8x32xf32, #tpu.memory_space<vmem>>, %arg9: memref<1x4x8x16xf32, #tpu.memory_space<vmem>>, %arg10: memref<16x64xf32, #tpu.memory_space<vmem>>, %arg11: memref<1x16xf32, #tpu.memory_space<vmem>>) attributes {dimension_semantics = [#tpu.dimension_semantics<parallel>, #tpu.dimension_semantics<arbitrary>], iteration_bounds = array<i64: 2, 2>, scalar_prefetch = 0 : i64, scratch_operands = 2 : i64, tpu.core_type = #tpu.core_type<tc>, window_params = [{transform_indices = @transform_0, window_bounds = array<i64: 1, 8, 32>}, {transform_indices = @transform_1, window_bounds = array<i64: 1, 16, 32>}, {pipeline_mode = #tpu.pipeline_mode<synchronous>, transform_indices = @transform_2, window_bounds = array<i64: 32, 32>}, {pipeline_mode = #tpu.pipeline_mode<synchronous>, transform_indices = @transform_3, window_bounds = array<i64: 1, 32>}, {pipeline_mode = #tpu.pipeline_mode<synchronous>, transform_indices = @transform_4, window_bounds = array<i64: 32, 64>}, {pipeline_mode = #tpu.pipeline_mode<synchronous>, transform_indices = @transform_5, window_bounds = array<i64: 1, 64>}, {transform_indices = @transform_6, window_bounds = array<i64: 1, 8, 32>}, {transform_indices = @transform_7, window_bounds = array<i64: 1, 4, 8, 16>}]} {
    %c0 = arith.constant 0 : index
    %c0_0 = arith.constant 0 : index
    %c0_1 = arith.constant 0 : index
    %0 = vector.load %arg2[%c0, %c0_0, %c0_1] : memref<1x8x32xf32, #tpu.memory_space<vmem>>, vector<1x8x32xf32>
    %1 = vector.shape_cast %0 : vector<1x8x32xf32> to vector<8x32xf32>
    %c0_i32 = arith.constant 0 : i32
    %2 = arith.cmpi eq, %arg1, %c0_i32 : i32
    %3 = arith.extui %2 : i1 to i32
    %cst = arith.constant 0xFF800000 : f32
    %c0_i32_2 = arith.constant 0 : i32
    %4 = arith.cmpi ne, %3, %c0_i32_2 : i32
    scf.if %4 {
      %c0_64 = arith.constant 0 : index
      %c0_65 = arith.constant 0 : index
      %c0_66 = arith.constant 0 : index
      %156 = vector.load %arg3[%c0_64, %c0_65, %c0_66] : memref<1x16x32xf32, #tpu.memory_space<vmem>>, vector<1x16x32xf32>
      %157 = vector.shape_cast %156 : vector<1x16x32xf32> to vector<16x32xf32>
      %c0_67 = arith.constant 0 : index
      %c0_68 = arith.constant 0 : index
      %158 = vector.load %arg6[%c0_67, %c0_68] : memref<32x64xf32, #tpu.memory_space<vmem>>, vector<32x64xf32>
      %cst_69 = arith.constant dense<0.000000e+00> : vector<16x64xf32>
      %159 = tpu.matmul %157, %158, %cst_69 {dimension_numbers = #tpu.dot_dimension_numbers<[1], [0], [0], [1], [0, 0, 1, 1], [], []>} : vector<16x32xf32>, vector<32x64xf32>, vector<16x64xf32> -> vector<16x64xf32>
      %c0_70 = arith.constant 0 : index
      %c0_71 = arith.constant 0 : index
      %160 = vector.load %arg7[%c0_70, %c0_71] : memref<1x64xf32, #tpu.memory_space<vmem>>, vector<1x64xf32>
      %161 = vector.broadcast %160 : vector<1x64xf32> to vector<16x64xf32>
      %162 = arith.addf %159, %161 : vector<16x64xf32>
      %c0_72 = arith.constant 0 : index
      %c0_73 = arith.constant 0 : index
      %163 = vector.load %arg10[%c0_72, %c0_73] : memref<16x64xf32, #tpu.memory_space<vmem>>, vector<16x64xf32>
      tpu.vector_store %arg10[%c0_72, %c0_73], %162 {strides = array<i32>} : memref<16x64xf32, #tpu.memory_space<vmem>>, vector<16x64xf32>,
      %164 = math.absf %157 : vector<16x32xf32>
      %cst_74 = arith.constant dense<0.000000e+00> : vector<16xf32>
      %165 = vector.multi_reduction <add>, %164, %cst_74 [1] : vector<16x32xf32> to vector<16xf32>
      %166 = vector.shape_cast %165 : vector<16xf32> to vector<1x16xf32>
      %cst_75 = arith.constant 0.000000e+00 : f32
      %167 = vector.broadcast %cst_75 : f32 to vector<1x16xf32>
      %168 = arith.cmpf oeq, %166, %167 : vector<1x16xf32>
      %cst_76 = arith.constant 0.000000e+00 : f32
      %169 = vector.broadcast %cst : f32 to vector<1x16xf32>
      %170 = vector.broadcast %cst_76 : f32 to vector<1x16xf32>
      %171 = arith.select %168, %169, %170 : vector<1x16xi1>, vector<1x16xf32>
      %c0_77 = arith.constant 0 : index
      %c0_78 = arith.constant 0 : index
      %172 = vector.load %arg11[%c0_77, %c0_78] : memref<1x16xf32, #tpu.memory_space<vmem>>, vector<1x16xf32>
      tpu.vector_store %arg11[%c0_77, %c0_78], %171 {strides = array<i32>} : memref<1x16xf32, #tpu.memory_space<vmem>>, vector<1x16xf32>,
    } else {
    }
    %c0_3 = arith.constant 0 : index
    %c0_4 = arith.constant 0 : index
    %5 = vector.load %arg4[%c0_3, %c0_4] : memref<32x32xf32, #tpu.memory_space<vmem>>, vector<32x32xf32>
    %cst_5 = arith.constant dense<0.000000e+00> : vector<8x32xf32>
    %6 = tpu.matmul %1, %5, %cst_5 {dimension_numbers = #tpu.dot_dimension_numbers<[1], [0], [0], [1], [0, 0, 1, 1], [], []>} : vector<8x32xf32>, vector<32x32xf32>, vector<8x32xf32> -> vector<8x32xf32>
    %c0_6 = arith.constant 0 : index
    %c0_7 = arith.constant 0 : index
    %7 = vector.load %arg5[%c0_6, %c0_7] : memref<1x32xf32, #tpu.memory_space<vmem>>, vector<1x32xf32>
    %8 = vector.broadcast %7 : vector<1x32xf32> to vector<8x32xf32>
    %9 = arith.addf %6, %8 : vector<8x32xf32>
    %c0_8 = arith.constant 0 : index
    %c0_9 = arith.constant 0 : index
    %10 = vector.load %arg10[%c0_8, %c0_9] : memref<16x64xf32, #tpu.memory_space<vmem>>, vector<16x64xf32>
    %c0_10 = arith.constant 0 : index
    %c0_11 = arith.constant 0 : index
    %11 = vector.load %arg11[%c0_10, %c0_11] : memref<1x16xf32, #tpu.memory_space<vmem>>, vector<1x16xf32>
    %12 = math.absf %1 : vector<8x32xf32>
    %cst_12 = arith.constant dense<0.000000e+00> : vector<8xf32>
    %13 = vector.multi_reduction <add>, %12, %cst_12 [1] : vector<8x32xf32> to vector<8xf32>
    %14 = vector.shape_cast %13 : vector<8xf32> to vector<8x1xf32>
    %cst_13 = arith.constant 0.000000e+00 : f32
    %15 = vector.broadcast %cst_13 : f32 to vector<8x1xf32>
    %16 = arith.cmpf oeq, %14, %15 : vector<8x1xf32>
    %cst_14 = arith.constant 0.000000e+00 : f32
    %cst_15 = arith.constant 1.000000e+00 : f32
    %17 = vector.broadcast %cst_14 : f32 to vector<8x1xf32>
    %18 = vector.broadcast %cst_15 : f32 to vector<8x1xf32>
    %19 = arith.select %16, %17, %18 : vector<8x1xi1>, vector<8x1xf32>
    %20 = vector.extract_strided_slice %9 {offsets = [0, 0], sizes = [8, 8], strides = [1, 1]} : vector<8x32xf32> to vector<8x8xf32>
    %21 = vector.extract_strided_slice %10 {offsets = [0, 0], sizes = [16, 8], strides = [1, 1]} : vector<16x64xf32> to vector<16x8xf32>
    %22 = vector.extract_strided_slice %10 {offsets = [0, 32], sizes = [16, 8], strides = [1, 1]} : vector<16x64xf32> to vector<16x8xf32>
    %cst_16 = arith.constant dense<0.000000e+00> : vector<8x16xf32>
    %23 = tpu.matmul %20, %21, %cst_16 {dimension_numbers = #tpu.dot_dimension_numbers<[1], [1], [0], [0], [0, 0, 1, 0], [], []>} : vector<8x8xf32>, vector<16x8xf32>, vector<8x16xf32> -> vector<8x16xf32>
    %24 = vector.broadcast %11 : vector<1x16xf32> to vector<8x16xf32>
    %25 = arith.addf %23, %24 : vector<8x16xf32>
    %cst_17 = arith.constant dense<0xFF800000> : vector<8xf32>
    %26 = vector.multi_reduction <maximumf>, %25, %cst_17 [1] : vector<8x16xf32> to vector<8xf32>
    %27 = vector.shape_cast %26 : vector<8xf32> to vector<8x1xf32>
    %cst_18 = arith.constant 0xFF800000 : f32
    %28 = vector.broadcast %cst_18 : f32 to vector<8x1xf32>
    %29 = arith.cmpf ogt, %27, %28 : vector<8x1xf32>
    %cst_19 = arith.constant 0.000000e+00 : f32
    %30 = vector.broadcast %cst_19 : f32 to vector<8x1xf32>
    %31 = arith.select %29, %27, %30 : vector<8x1xi1>, vector<8x1xf32>
    %32 = vector.broadcast %31 : vector<8x1xf32> to vector<8x16xf32>
    %33 = arith.subf %25, %32 : vector<8x16xf32>
    %34 = math.exp %33 : vector<8x16xf32>
    %cst_20 = arith.constant dense<0.000000e+00> : vector<8xf32>
    %35 = vector.multi_reduction <add>, %34, %cst_20 [1] : vector<8x16xf32> to vector<8xf32>
    %36 = vector.shape_cast %35 : vector<8xf32> to vector<8x1xf32>
    %cst_21 = arith.constant 0.000000e+00 : f32
    %37 = vector.broadcast %cst_21 : f32 to vector<8x1xf32>
    %38 = arith.cmpf ogt, %36, %37 : vector<8x1xf32>
    %39 = arith.andi %29, %38 : vector<8x1xi1>
    %40 = tpu.reciprocal %36 {approx = true} : vector<8x1xf32> -> vector<8x1xf32>
    %41 = vector.broadcast %40 : vector<8x1xf32> to vector<8x16xf32>
    %42 = arith.mulf %34, %41 : vector<8x16xf32>
    %cst_22 = arith.constant 0.000000e+00 : f32
    %43 = vector.shape_cast %39 : vector<8x1xi1> to vector<8x1xi1>
    %44 = vector.broadcast %43 : vector<8x1xi1> to vector<8x16xi1>
    %45 = vector.broadcast %cst_22 : f32 to vector<8x16xf32>
    %46 = arith.select %44, %42, %45 : vector<8x16xi1>, vector<8x16xf32>
    %47 = vector.broadcast %19 : vector<8x1xf32> to vector<8x16xf32>
    %48 = arith.mulf %46, %47 : vector<8x16xf32>
    %c0_23 = arith.constant 0 : index
    %c0_24 = arith.constant 0 : index
    %c0_25 = arith.constant 0 : index
    %c0_26 = arith.constant 0 : index
    %49 = vector.load %arg9[%c0_23, %c0_24, %c0_25, %c0_26] : memref<1x4x8x16xf32, #tpu.memory_space<vmem>>, vector<1x1x8x16xf32>
    %50 = vector.shape_cast %49 : vector<1x1x8x16xf32> to vector<8x16xf32>
    %51 = vector.shape_cast %48 : vector<8x16xf32> to vector<1x1x8x16xf32>
    tpu.vector_store %arg9[%c0_23, %c0_24, %c0_25, %c0_26], %51 {strides = array<i32>} : memref<1x4x8x16xf32, #tpu.memory_space<vmem>>, vector<1x1x8x16xf32>,
    %cst_27 = arith.constant dense<0.000000e+00> : vector<8x8xf32>
    %52 = tpu.matmul %48, %22, %cst_27 {dimension_numbers = #tpu.dot_dimension_numbers<[1], [0], [0], [1], [0, 0, 1, 1], [], []>} : vector<8x16xf32>, vector<16x8xf32>, vector<8x8xf32> -> vector<8x8xf32>
    %53 = vector.extract_strided_slice %9 {offsets = [0, 8], sizes = [8, 8], strides = [1, 1]} : vector<8x32xf32> to vector<8x8xf32>
    %54 = vector.extract_strided_slice %10 {offsets = [0, 8], sizes = [16, 8], strides = [1, 1]} : vector<16x64xf32> to vector<16x8xf32>
    %55 = vector.extract_strided_slice %10 {offsets = [0, 40], sizes = [16, 8], strides = [1, 1]} : vector<16x64xf32> to vector<16x8xf32>
    %cst_28 = arith.constant dense<0.000000e+00> : vector<8x16xf32>
    %56 = tpu.matmul %53, %54, %cst_28 {dimension_numbers = #tpu.dot_dimension_numbers<[1], [1], [0], [0], [0, 0, 1, 0], [], []>} : vector<8x8xf32>, vector<16x8xf32>, vector<8x16xf32> -> vector<8x16xf32>
    %57 = vector.broadcast %11 : vector<1x16xf32> to vector<8x16xf32>
    %58 = arith.addf %56, %57 : vector<8x16xf32>
    %cst_29 = arith.constant dense<0xFF800000> : vector<8xf32>
    %59 = vector.multi_reduction <maximumf>, %58, %cst_29 [1] : vector<8x16xf32> to vector<8xf32>
    %60 = vector.shape_cast %59 : vector<8xf32> to vector<8x1xf32>
    %cst_30 = arith.constant 0xFF800000 : f32
    %61 = vector.broadcast %cst_30 : f32 to vector<8x1xf32>
    %62 = arith.cmpf ogt, %60, %61 : vector<8x1xf32>
    %cst_31 = arith.constant 0.000000e+00 : f32
    %63 = vector.broadcast %cst_31 : f32 to vector<8x1xf32>
    %64 = arith.select %62, %60, %63 : vector<8x1xi1>, vector<8x1xf32>
    %65 = vector.broadcast %64 : vector<8x1xf32> to vector<8x16xf32>
    %66 = arith.subf %58, %65 : vector<8x16xf32>
    %67 = math.exp %66 : vector<8x16xf32>
    %cst_32 = arith.constant dense<0.000000e+00> : vector<8xf32>
    %68 = vector.multi_reduction <add>, %67, %cst_32 [1] : vector<8x16xf32> to vector<8xf32>
    %69 = vector.shape_cast %68 : vector<8xf32> to vector<8x1xf32>
    %cst_33 = arith.constant 0.000000e+00 : f32
    %70 = vector.broadcast %cst_33 : f32 to vector<8x1xf32>
    %71 = arith.cmpf ogt, %69, %70 : vector<8x1xf32>
    %72 = arith.andi %62, %71 : vector<8x1xi1>
    %73 = tpu.reciprocal %69 {approx = true} : vector<8x1xf32> -> vector<8x1xf32>
    %74 = vector.broadcast %73 : vector<8x1xf32> to vector<8x16xf32>
    %75 = arith.mulf %67, %74 : vector<8x16xf32>
    %cst_34 = arith.constant 0.000000e+00 : f32
    %76 = vector.shape_cast %72 : vector<8x1xi1> to vector<8x1xi1>
    %77 = vector.broadcast %76 : vector<8x1xi1> to vector<8x16xi1>
    %78 = vector.broadcast %cst_34 : f32 to vector<8x16xf32>
    %79 = arith.select %77, %75, %78 : vector<8x16xi1>, vector<8x16xf32>
    %80 = vector.broadcast %19 : vector<8x1xf32> to vector<8x16xf32>
    %81 = arith.mulf %79, %80 : vector<8x16xf32>
    %c0_35 = arith.constant 0 : index
    %c1 = arith.constant 1 : index
    %c0_36 = arith.constant 0 : index
    %c0_37 = arith.constant 0 : index
    %82 = vector.load %arg9[%c0_35, %c1, %c0_36, %c0_37] : memref<1x4x8x16xf32, #tpu.memory_space<vmem>>, vector<1x1x8x16xf32>
    %83 = vector.shape_cast %82 : vector<1x1x8x16xf32> to vector<8x16xf32>
    %84 = vector.shape_cast %81 : vector<8x16xf32> to vector<1x1x8x16xf32>
    tpu.vector_store %arg9[%c0_35, %c1, %c0_36, %c0_37], %84 {strides = array<i32>} : memref<1x4x8x16xf32, #tpu.memory_space<vmem>>, vector<1x1x8x16xf32>,
    %cst_38 = arith.constant dense<0.000000e+00> : vector<8x8xf32>
    %85 = tpu.matmul %81, %55, %cst_38 {dimension_numbers = #tpu.dot_dimension_numbers<[1], [0], [0], [1], [0, 0, 1, 1], [], []>} : vector<8x16xf32>, vector<16x8xf32>, vector<8x8xf32> -> vector<8x8xf32>
    %86 = vector.extract_strided_slice %9 {offsets = [0, 16], sizes = [8, 8], strides = [1, 1]} : vector<8x32xf32> to vector<8x8xf32>
    %87 = vector.extract_strided_slice %10 {offsets = [0, 16], sizes = [16, 8], strides = [1, 1]} : vector<16x64xf32> to vector<16x8xf32>
    %88 = vector.extract_strided_slice %10 {offsets = [0, 48], sizes = [16, 8], strides = [1, 1]} : vector<16x64xf32> to vector<16x8xf32>
    %cst_39 = arith.constant dense<0.000000e+00> : vector<8x16xf32>
    %89 = tpu.matmul %86, %87, %cst_39 {dimension_numbers = #tpu.dot_dimension_numbers<[1], [1], [0], [0], [0, 0, 1, 0], [], []>} : vector<8x8xf32>, vector<16x8xf32>, vector<8x16xf32> -> vector<8x16xf32>
    %90 = vector.broadcast %11 : vector<1x16xf32> to vector<8x16xf32>
    %91 = arith.addf %89, %90 : vector<8x16xf32>
    %cst_40 = arith.constant dense<0xFF800000> : vector<8xf32>
    %92 = vector.multi_reduction <maximumf>, %91, %cst_40 [1] : vector<8x16xf32> to vector<8xf32>
    %93 = vector.shape_cast %92 : vector<8xf32> to vector<8x1xf32>
    %cst_41 = arith.constant 0xFF800000 : f32
    %94 = vector.broadcast %cst_41 : f32 to vector<8x1xf32>
    %95 = arith.cmpf ogt, %93, %94 : vector<8x1xf32>
    %cst_42 = arith.constant 0.000000e+00 : f32
    %96 = vector.broadcast %cst_42 : f32 to vector<8x1xf32>
    %97 = arith.select %95, %93, %96 : vector<8x1xi1>, vector<8x1xf32>
    %98 = vector.broadcast %97 : vector<8x1xf32> to vector<8x16xf32>
    %99 = arith.subf %91, %98 : vector<8x16xf32>
    %100 = math.exp %99 : vector<8x16xf32>
    %cst_43 = arith.constant dense<0.000000e+00> : vector<8xf32>
    %101 = vector.multi_reduction <add>, %100, %cst_43 [1] : vector<8x16xf32> to vector<8xf32>
    %102 = vector.shape_cast %101 : vector<8xf32> to vector<8x1xf32>
    %cst_44 = arith.constant 0.000000e+00 : f32
    %103 = vector.broadcast %cst_44 : f32 to vector<8x1xf32>
    %104 = arith.cmpf ogt, %102, %103 : vector<8x1xf32>
    %105 = arith.andi %95, %104 : vector<8x1xi1>
    %106 = tpu.reciprocal %102 {approx = true} : vector<8x1xf32> -> vector<8x1xf32>
    %107 = vector.broadcast %106 : vector<8x1xf32> to vector<8x16xf32>
    %108 = arith.mulf %100, %107 : vector<8x16xf32>
    %cst_45 = arith.constant 0.000000e+00 : f32
    %109 = vector.shape_cast %105 : vector<8x1xi1> to vector<8x1xi1>
    %110 = vector.broadcast %109 : vector<8x1xi1> to vector<8x16xi1>
    %111 = vector.broadcast %cst_45 : f32 to vector<8x16xf32>
    %112 = arith.select %110, %108, %111 : vector<8x16xi1>, vector<8x16xf32>
    %113 = vector.broadcast %19 : vector<8x1xf32> to vector<8x16xf32>
    %114 = arith.mulf %112, %113 : vector<8x16xf32>
    %c0_46 = arith.constant 0 : index
    %c2 = arith.constant 2 : index
    %c0_47 = arith.constant 0 : index
    %c0_48 = arith.constant 0 : index
    %115 = vector.load %arg9[%c0_46, %c2, %c0_47, %c0_48] : memref<1x4x8x16xf32, #tpu.memory_space<vmem>>, vector<1x1x8x16xf32>
    %116 = vector.shape_cast %115 : vector<1x1x8x16xf32> to vector<8x16xf32>
    %117 = vector.shape_cast %114 : vector<8x16xf32> to vector<1x1x8x16xf32>
    tpu.vector_store %arg9[%c0_46, %c2, %c0_47, %c0_48], %117 {strides = array<i32>} : memref<1x4x8x16xf32, #tpu.memory_space<vmem>>, vector<1x1x8x16xf32>,
    %cst_49 = arith.constant dense<0.000000e+00> : vector<8x8xf32>
    %118 = tpu.matmul %114, %88, %cst_49 {dimension_numbers = #tpu.dot_dimension_numbers<[1], [0], [0], [1], [0, 0, 1, 1], [], []>} : vector<8x16xf32>, vector<16x8xf32>, vector<8x8xf32> -> vector<8x8xf32>
    %119 = vector.extract_strided_slice %9 {offsets = [0, 24], sizes = [8, 8], strides = [1, 1]} : vector<8x32xf32> to vector<8x8xf32>
    %120 = vector.extract_strided_slice %10 {offsets = [0, 24], sizes = [16, 8], strides = [1, 1]} : vector<16x64xf32> to vector<16x8xf32>
    %121 = vector.extract_strided_slice %10 {offsets = [0, 56], sizes = [16, 8], strides = [1, 1]} : vector<16x64xf32> to vector<16x8xf32>
    %cst_50 = arith.constant dense<0.000000e+00> : vector<8x16xf32>
    %122 = tpu.matmul %119, %120, %cst_50 {dimension_numbers = #tpu.dot_dimension_numbers<[1], [1], [0], [0], [0, 0, 1, 0], [], []>} : vector<8x8xf32>, vector<16x8xf32>, vector<8x16xf32> -> vector<8x16xf32>
    %123 = vector.broadcast %11 : vector<1x16xf32> to vector<8x16xf32>
    %124 = arith.addf %122, %123 : vector<8x16xf32>
    %cst_51 = arith.constant dense<0xFF800000> : vector<8xf32>
    %125 = vector.multi_reduction <maximumf>, %124, %cst_51 [1] : vector<8x16xf32> to vector<8xf32>
    %126 = vector.shape_cast %125 : vector<8xf32> to vector<8x1xf32>
    %cst_52 = arith.constant 0xFF800000 : f32
    %127 = vector.broadcast %cst_52 : f32 to vector<8x1xf32>
    %128 = arith.cmpf ogt, %126, %127 : vector<8x1xf32>
    %cst_53 = arith.constant 0.000000e+00 : f32
    %129 = vector.broadcast %cst_53 : f32 to vector<8x1xf32>
    %130 = arith.select %128, %126, %129 : vector<8x1xi1>, vector<8x1xf32>
    %131 = vector.broadcast %130 : vector<8x1xf32> to vector<8x16xf32>
    %132 = arith.subf %124, %131 : vector<8x16xf32>
    %133 = math.exp %132 : vector<8x16xf32>
    %cst_54 = arith.constant dense<0.000000e+00> : vector<8xf32>
    %134 = vector.multi_reduction <add>, %133, %cst_54 [1] : vector<8x16xf32> to vector<8xf32>
    %135 = vector.shape_cast %134 : vector<8xf32> to vector<8x1xf32>
    %cst_55 = arith.constant 0.000000e+00 : f32
    %136 = vector.broadcast %cst_55 : f32 to vector<8x1xf32>
    %137 = arith.cmpf ogt, %135, %136 : vector<8x1xf32>
    %138 = arith.andi %128, %137 : vector<8x1xi1>
    %139 = tpu.reciprocal %135 {approx = true} : vector<8x1xf32> -> vector<8x1xf32>
    %140 = vector.broadcast %139 : vector<8x1xf32> to vector<8x16xf32>
    %141 = arith.mulf %133, %140 : vector<8x16xf32>
    %cst_56 = arith.constant 0.000000e+00 : f32
    %142 = vector.shape_cast %138 : vector<8x1xi1> to vector<8x1xi1>
    %143 = vector.broadcast %142 : vector<8x1xi1> to vector<8x16xi1>
    %144 = vector.broadcast %cst_56 : f32 to vector<8x16xf32>
    %145 = arith.select %143, %141, %144 : vector<8x16xi1>, vector<8x16xf32>
    %146 = vector.broadcast %19 : vector<8x1xf32> to vector<8x16xf32>
    %147 = arith.mulf %145, %146 : vector<8x16xf32>
    %c0_57 = arith.constant 0 : index
    %c3 = arith.constant 3 : index
    %c0_58 = arith.constant 0 : index
    %c0_59 = arith.constant 0 : index
    %148 = vector.load %arg9[%c0_57, %c3, %c0_58, %c0_59] : memref<1x4x8x16xf32, #tpu.memory_space<vmem>>, vector<1x1x8x16xf32>
    %149 = vector.shape_cast %148 : vector<1x1x8x16xf32> to vector<8x16xf32>
    %150 = vector.shape_cast %147 : vector<8x16xf32> to vector<1x1x8x16xf32>
    tpu.vector_store %arg9[%c0_57, %c3, %c0_58, %c0_59], %150 {strides = array<i32>} : memref<1x4x8x16xf32, #tpu.memory_space<vmem>>, vector<1x1x8x16xf32>,
    %cst_60 = arith.constant dense<0.000000e+00> : vector<8x8xf32>
    %151 = tpu.matmul %147, %121, %cst_60 {dimension_numbers = #tpu.dot_dimension_numbers<[1], [0], [0], [1], [0, 0, 1, 1], [], []>} : vector<8x16xf32>, vector<16x8xf32>, vector<8x8xf32> -> vector<8x8xf32>
    %152 = tpu.concatenate %52, %85, %118, %151 in 1 : vector<8x8xf32>, vector<8x8xf32>, vector<8x8xf32>, vector<8x8xf32> -> vector<8x32xf32>
    %c0_61 = arith.constant 0 : index
    %c0_62 = arith.constant 0 : index
    %c0_63 = arith.constant 0 : index
    %153 = vector.load %arg8[%c0_61, %c0_62, %c0_63] : memref<1x8x32xf32, #tpu.memory_space<vmem>>, vector<1x8x32xf32>
    %154 = vector.shape_cast %153 : vector<1x8x32xf32> to vector<8x32xf32>
    %155 = vector.shape_cast %152 : vector<8x32xf32> to vector<1x8x32xf32>
    tpu.vector_store %arg8[%c0_61, %c0_62, %c0_63], %155 {strides = array<i32>} : memref<1x8x32xf32, #tpu.memory_space<vmem>>, vector<1x8x32xf32>,
    return
  }
  func.func @transform_0(%arg0: i32, %arg1: i32) -> (i32, i32, i32) {
    %c0_i32 = arith.constant 0 : i32
    %c0_i32_0 = arith.constant 0 : i32
    return %arg0, %arg1, %c0_i32 : i32, i32, i32
  }
  func.func @transform_1(%arg0: i32, %arg1: i32) -> (i32, i32, i32) {
    %c0_i32 = arith.constant 0 : i32
    %c0_i32_0 = arith.constant 0 : i32
    %c0_i32_1 = arith.constant 0 : i32
    return %arg0, %c0_i32, %c0_i32_0 : i32, i32, i32
  }
  func.func @transform_2(%arg0: i32, %arg1: i32) -> (i32, i32) {
    %c0_i32 = arith.constant 0 : i32
    %c0_i32_0 = arith.constant 0 : i32
    %c0_i32_1 = arith.constant 0 : i32
    return %c0_i32, %c0_i32_0 : i32, i32
  }
  func.func @transform_3(%arg0: i32, %arg1: i32) -> (i32, i32) {
    %c0_i32 = arith.constant 0 : i32
    %c0_i32_0 = arith.constant 0 : i32
    %c0_i32_1 = arith.constant 0 : i32
    return %c0_i32, %c0_i32_0 : i32, i32
  }
  func.func @transform_4(%arg0: i32, %arg1: i32) -> (i32, i32) {
    %c0_i32 = arith.constant 0 : i32
    %c0_i32_0 = arith.constant 0 : i32
    %c0_i32_1 = arith.constant 0 : i32
    return %c0_i32, %c0_i32_0 : i32, i32
  }
  func.func @transform_5(%arg0: i32, %arg1: i32) -> (i32, i32) {
    %c0_i32 = arith.constant 0 : i32
    %c0_i32_0 = arith.constant 0 : i32
    %c0_i32_1 = arith.constant 0 : i32
    return %c0_i32, %c0_i32_0 : i32, i32
  }
  func.func @transform_6(%arg0: i32, %arg1: i32) -> (i32, i32, i32) {
    %c0_i32 = arith.constant 0 : i32
    %c0_i32_0 = arith.constant 0 : i32
    return %arg0, %arg1, %c0_i32 : i32, i32, i32
  }
  func.func @transform_7(%arg0: i32, %arg1: i32) -> (i32, i32, i32, i32) {
    %c0_i32 = arith.constant 0 : i32
    %c0_i32_0 = arith.constant 0 : i32
    %c0_i32_1 = arith.constant 0 : i32
    return %arg0, %c0_i32, %arg1, %c0_i32_0 : i32, i32, i32, i32
  }
}

</mosaic_0001>

<llo_original>
// kernel: tpu_custom_call.1
$region0: #{tpu_custom_call.1}
  #allocation0 [shape = 'u32[]', space=smem, size = 0x4, offset = 0x4, fixed_abs, tag = 'smem constant byte address 0x4 - core index']
  #allocation1 [shape = 'u32[72,128]{1,0:T(1,128)}', space=vmem, size = 0x9000, scoped, tag = 'internal scratch']
  #allocation2 [shape = 'f32[16,64]{1,0:T(8,128)}', space=vmem, size = 0x2000, scoped, tag = 'scratch operand']
  #allocation3 [shape = 'f32[1,16]{1,0:T(1,128)}', space=vmem, size = 0x200, scoped, tag = 'scratch operand']
  %s0 = inlined_call_operand.hbm [shape: f32[2,16,32], index: 0, kind: input, shape index: {}]
  %s1 = inlined_call_operand.hbm [shape: f32[2,16,32], index: 1, kind: input, shape index: {}]
  %s2 = inlined_call_operand.hbm [shape: f32[32,32], index: 2, kind: input, shape index: {}]
  %s3 = inlined_call_operand.vmem [shape: f32[1,32], index: 3, kind: input, shape index: {}]
  %s4 = inlined_call_operand.hbm [shape: f32[32,64], index: 4, kind: input, shape index: {}]
  %s5 = inlined_call_operand.vmem [shape: f32[1,64], index: 5, kind: input, shape index: {}]
  %s6 = inlined_call_operand.hbm [shape: f32[2,16,32], index: 6, kind: output, shape index: {0}]
  %s7 = inlined_call_operand.hbm [shape: f32[2,4,16,16], index: 7, kind: output, shape index: {1}]
  %8 = xla_tuple %s6, %s7
  %s9 = sld [smem:[#allocation0]]
  $region85: #{tpu_custom_call.1} parent=0
    _
  %s11 = ssub.s32 1, %s9
  %s12 = scalar_select 0, %s11, %s9
  $region1: #{tpu_custom_call.1} parent=0
    #allocation4 [shape = 'u8[8192]{0}', space=vmem, size = 0x2000, scoped, tag = 'input window, operand 0']
    #allocation5 [shape = 's32[2]{0}', space=sflag, size = 0x8, scoped, tag = 'scoped memory for tpu_custom_call.1']
    #allocation6 [shape = 's32[2]{0}', space=sflag, size = 0x8, scoped, tag = 'scoped memory for tpu_custom_call.1']
    #allocation7 [shape = 'u8[16384]{0}', space=vmem, size = 0x4000, scoped, tag = 'input window, operand 1']
    #allocation8 [shape = 's32[2]{0}', space=sflag, size = 0x8, scoped, tag = 'scoped memory for tpu_custom_call.1']
    #allocation9 [shape = 'u8[16384]{0}', space=vmem, size = 0x4000, scoped, tag = 'input window, operand 2, single buffered']
    #allocation10 [shape = 'u8[16384]{0}', space=vmem, size = 0x4000, scoped, tag = 'input window, operand 4, single buffered']
    #allocation11 [shape = 's32[1]{0}', space=sflag, size = 0x4, scoped, tag = 'scoped memory for tpu_custom_call.1']
    #allocation12 [shape = 'u8[8192]{0}', space=vmem, size = 0x2000, scoped, tag = 'output window, operand 0']
    #allocation13 [shape = 'u8[32768]{0}', space=vmem, size = 0x8000, scoped, tag = 'output window, operand 1']
    #allocation14 [shape = 's32[2]{0}', space=sflag, size = 0x8, scoped, tag = 'scoped memory for tpu_custom_call.1']
    %13 = vsyncpa [#allocation5], 0
    %s14 = scalar_lea.sflag [#allocation5], 1
    %15 = vsyncpa %s14, 0
    %16 = vsyncpa [#allocation8], 0
    %s17 = scalar_lea.sflag [#allocation8], 1
    %18 = vsyncpa %s17, 0
    %19 = vsyncpa [#allocation11], 0
    %20 = vsyncpa [#allocation6], 0
    %s21 = scalar_lea.sflag [#allocation6], 1
    %22 = vsyncpa %s21, 0
    %23 = vsyncpa [#allocation14], 0
    %s24 = scalar_lea.sflag [#allocation14], 1
    %25 = vsyncpa %s24, 0
    loop: start=0, step=1, limit=6
    $region2: #{tpu_custom_call.1} parent=1 // loop_pre_header
      _
    $region3: #{tpu_custom_call.1} parent=1 // loop_header
      %s27 = sphi 0, %s31
      %p28 = scmp.ge.s32.totalorder %s27, 6
      %s34 = sphi 0, %s46
      %s35 = sphi 0, %s42
      %s36 = sphi 0, %s34
      %s37 = sphi 0, %s35
      %s38 = sphi 0, %s36
      %s39 = sphi 0, %s37
      %s51 = sphi 0, %s53
      %s54 = sphi 0, %s51
      %s55 = sphi 0, %s54
      %s71 = sphi 0, %s55
      %s77 = sphi 0, %s79
      %s80 = sphi 0, %s77
      %s81 = sphi 0, %s80
      %s97 = sphi 0, %s81
      %s101 = sphi 0, %s101
      %s103 = sphi 0, %s101
      %s104 = sphi 0, %s103
      %s118 = sphi 0, %s104
      %s122 = sphi 0, %s122
      %s124 = sphi 0, %s122
      %s125 = sphi 0, %s124
      %s139 = sphi 0, %s125
      %s143 = sphi 0, %s143
      %s145 = sphi 0, %s143
      %s146 = sphi 0, %s145
      %s160 = sphi 0, %s146
      %s164 = sphi 0, %s164
      %s166 = sphi 0, %s164
      %s167 = sphi 0, %s166
      %s181 = sphi 0, %s167
      %s189 = sphi 0, %s191
      %s192 = sphi 0, %s189
      %s193 = sphi 0, %s192
      %s209 = sphi 0, %s193
      %s217 = sphi 0, %s219
      %s220 = sphi 0, %s217
      %s221 = sphi 0, %s220
      %s237 = sphi 0, %s221
    $region4: #{tpu_custom_call.1} parent=1 // loop_header_branch
      %30 = sbr.rel (%p28) target = $region8
    $region5: #{tpu_custom_call.1} parent=1 // loop_body
      %s32 = ssub.s32 %s27, 1
      %s33 = ssub.s32 %s27, 2
      %s40 = sadd.s32 1, %s35
      %p41 = scmp.ge.s32.totalorder %s40, 2
      %s42 = scalar_select %p41, 0, %s40
      %s43 = sadd.s32 1, %s34
      %s44 = scalar_select %p41, %s43, %s34
      %p45 = scmp.ge.s32.totalorder %s44, 2
      %s46 = scalar_select %p45, 0, %s44
      %s47 = ssub.s32 %s34, %s46
      %s48 = ssub.s32 %s35, %s42
      %s49 = sor.u32 %s47, %s48
      %p50 = scmp.eq.s32.totalorder %s49, 0
      %s52 = sadd.s32 %s51, 1
      %s53 = scalar_select %p50, %s51, %s52
      %p56 = pneg %p50
      %p57 = scmp.eq.s32.totalorder %s27, 3
      %p58 = por %p56, %p57
      %p59 = scmp.ne.s32.totalorder %s51, %s54
      %p60 = scmp.eq.s32.totalorder %s27, 0
      %p61 = por %p59, %p60
      %p62 = scmp.ne.s32.totalorder %s51, %s54
      %p63 = scmp.eq.s32.totalorder %s32, 3
      %p64 = por %p62, %p63
      %p65 = scmp.ne.s32.totalorder %s54, %s55
      %p66 = scmp.eq.s32.totalorder %s32, 0
      %p67 = por %p65, %p66
      %p68 = scmp.ne.s32.totalorder %s54, %s55
      %p69 = scmp.eq.s32.totalorder %s33, 3
      %p70 = por %p68, %p69
      %p72 = scmp.ne.s32.totalorder %s55, %s71
      %p73 = scmp.eq.s32.totalorder %s33, 0
      %p74 = por %p72, %p73
      %s75 = ssub.s32 %s34, %s46
      %p76 = scmp.eq.s32.totalorder %s75, 0
      %s78 = sadd.s32 %s77, 1
      %s79 = scalar_select %p76, %s77, %s78
      %p82 = pneg %p76
      %p83 = scmp.eq.s32.totalorder %s27, 3
      %p84 = por %p82, %p83
      %p85 = scmp.ne.s32.totalorder %s77, %s80
      %p86 = scmp.eq.s32.totalorder %s27, 0
      %p87 = por %p85, %p86
      %p88 = scmp.ne.s32.totalorder %s77, %s80
      %p89 = scmp.eq.s32.totalorder %s32, 3
      %p90 = por %p88, %p89
      %p91 = scmp.ne.s32.totalorder %s80, %s81
      %p92 = scmp.eq.s32.totalorder %s32, 0
      %p93 = por %p91, %p92
      %p94 = scmp.ne.s32.totalorder %s80, %s81
      %p95 = scmp.eq.s32.totalorder %s33, 3
      %p96 = por %p94, %p95
      %p98 = scmp.ne.s32.totalorder %s81, %s97
      %p99 = scmp.eq.s32.totalorder %s33, 0
      %p100 = por %p98, %p99
      %s102 = sadd.s32 %s101, 1
      %p105 = scmp.eq.s32.totalorder %s27, 3
      %p106 = scmp.ne.s32.totalorder %s101, %s103
      %p107 = scmp.eq.s32.totalorder %s27, 0
      %p108 = por %p106, %p107
      %p109 = scmp.ne.s32.totalorder %s101, %s103
      %p110 = scmp.eq.s32.totalorder %s32, 3
      %p111 = por %p109, %p110
      %p112 = scmp.ne.s32.totalorder %s103, %s104
      %p113 = scmp.eq.s32.totalorder %s32, 0
      %p114 = por %p112, %p113
      %p115 = scmp.ne.s32.totalorder %s103, %s104
      %p116 = scmp.eq.s32.totalorder %s33, 3
      %p117 = por %p115, %p116
      %p119 = scmp.ne.s32.totalorder %s104, %s118
      %p120 = scmp.eq.s32.totalorder %s33, 0
      %p121 = por %p119, %p120
      %s123 = sadd.s32 %s122, 1
      %p126 = scmp.eq.s32.totalorder %s27, 3
      %p127 = scmp.ne.s32.totalorder %s122, %s124
      %p128 = scmp.eq.s32.totalorder %s27, 0
      %p129 = por %p127, %p128
      %p130 = scmp.ne.s32.totalorder %s122, %s124
      %p131 = scmp.eq.s32.totalorder %s32, 3
      %p132 = por %p130, %p131
      %p133 = scmp.ne.s32.totalorder %s124, %s125
      %p134 = scmp.eq.s32.totalorder %s32, 0
      %p135 = por %p133, %p134
      %p136 = scmp.ne.s32.totalorder %s124, %s125
      %p137 = scmp.eq.s32.totalorder %s33, 3
      %p138 = por %p136, %p137
      %p140 = scmp.ne.s32.totalorder %s125, %s139
      %p141 = scmp.eq.s32.totalorder %s33, 0
      %p142 = por %p140, %p141
      %s144 = sadd.s32 %s143, 1
      %p147 = scmp.eq.s32.totalorder %s27, 3
      %p148 = scmp.ne.s32.totalorder %s143, %s145
      %p149 = scmp.eq.s32.totalorder %s27, 0
      %p150 = por %p148, %p149
      %p151 = scmp.ne.s32.totalorder %s143, %s145
      %p152 = scmp.eq.s32.totalorder %s32, 3
      %p153 = por %p151, %p152
      %p154 = scmp.ne.s32.totalorder %s145, %s146
      %p155 = scmp.eq.s32.totalorder %s32, 0
      %p156 = por %p154, %p155
      %p157 = scmp.ne.s32.totalorder %s145, %s146
      %p158 = scmp.eq.s32.totalorder %s33, 3
      %p159 = por %p157, %p158
      %p161 = scmp.ne.s32.totalorder %s146, %s160
      %p162 = scmp.eq.s32.totalorder %s33, 0
      %p163 = por %p161, %p162
      %s165 = sadd.s32 %s164, 1
      %p168 = scmp.eq.s32.totalorder %s27, 3
      %p169 = scmp.ne.s32.totalorder %s164, %s166
      %p170 = scmp.eq.s32.totalorder %s27, 0
      %p171 = por %p169, %p170
      %p172 = scmp.ne.s32.totalorder %s164, %s166
      %p173 = scmp.eq.s32.totalorder %s32, 3
      %p174 = por %p172, %p173
      %p175 = scmp.ne.s32.totalorder %s166, %s167
      %p176 = scmp.eq.s32.totalorder %s32, 0
      %p177 = por %p175, %p176
      %p178 = scmp.ne.s32.totalorder %s166, %s167
      %p179 = scmp.eq.s32.totalorder %s33, 3
      %p180 = por %p178, %p179
      %p182 = scmp.ne.s32.totalorder %s167, %s181
      %p183 = scmp.eq.s32.totalorder %s33, 0
      %p184 = por %p182, %p183
      %s185 = ssub.s32 %s34, %s46
      %s186 = ssub.s32 %s35, %s42
      %s187 = sor.u32 %s185, %s186
      %p188 = scmp.eq.s32.totalorder %s187, 0
      %s190 = sadd.s32 %s189, 1
      %s191 = scalar_select %p188, %s189, %s190
      %p194 = pneg %p188
      %p195 = scmp.eq.s32.totalorder %s27, 3
      %p196 = por %p194, %p195
      %p197 = scmp.ne.s32.totalorder %s189, %s192
      %p198 = scmp.eq.s32.totalorder %s27, 0
      %p199 = por %p197, %p198
      %p200 = scmp.ne.s32.totalorder %s189, %s192
      %p201 = scmp.eq.s32.totalorder %s32, 3
      %p202 = por %p200, %p201
      %p203 = scmp.ne.s32.totalorder %s192, %s193
      %p204 = scmp.eq.s32.totalorder %s32, 0
      %p205 = por %p203, %p204
      %p206 = scmp.ne.s32.totalorder %s192, %s193
      %p207 = scmp.eq.s32.totalorder %s33, 3
      %p208 = por %p206, %p207
      %p210 = scmp.ne.s32.totalorder %s193, %s209
      %p211 = scmp.eq.s32.totalorder %s33, 0
      %p212 = por %p210, %p211
      %s213 = ssub.s32 %s34, %s46
      %s214 = ssub.s32 %s35, %s42
      %s215 = sor.u32 %s213, %s214
      %p216 = scmp.eq.s32.totalorder %s215, 0
      %s218 = sadd.s32 %s217, 1
      %s219 = scalar_select %p216, %s217, %s218
      %p222 = pneg %p216
      %p223 = scmp.eq.s32.totalorder %s27, 3
      %p224 = por %p222, %p223
      %p225 = scmp.ne.s32.totalorder %s217, %s220
      %p226 = scmp.eq.s32.totalorder %s27, 0
      %p227 = por %p225, %p226
      %p228 = scmp.ne.s32.totalorder %s217, %s220
      %p229 = scmp.eq.s32.totalorder %s32, 3
      %p230 = por %p228, %p229
      %p231 = scmp.ne.s32.totalorder %s220, %s221
      %p232 = scmp.eq.s32.totalorder %s32, 0
      %p233 = por %p231, %p232
      %p234 = scmp.ne.s32.totalorder %s220, %s221
      %p235 = scmp.eq.s32.totalorder %s33, 3
      %p236 = por %p234, %p235
      %p238 = scmp.ne.s32.totalorder %s221, %s237
      %p239 = scmp.eq.s32.totalorder %s33, 0
      %p240 = por %p238, %p239
      %p241 = scmp.le.s32.totalorder 1, %s27
      %p242 = scmp.lt.s32.totalorder %s27, 5
      %p243 = pnand %p241, %p242
      %p244 = pneg %p243
      // Predicated region
      $region9: #{tpu_custom_call.1} parent=5 // pred_check
        _
      $region10: #{tpu_custom_call.1} parent=5 // pred_check_branch
        %246 = sbr.rel (%p243) target = $region12
      $region11: #{tpu_custom_call.1} parent=5 // pred_region
        %s247 = ssub.s32 %s27, 1
        // Predicated region
        $region13: #{tpu_custom_call.1} parent=11 // pred_check
          %p248 = pneg %p114
        $region14: #{tpu_custom_call.1} parent=11 // pred_check_branch
          %250 = sbr.rel (%p248) target = $region16
        $region15: #{tpu_custom_call.1} parent=11 // pred_region
          %252 = vsyncadd [#allocation8], 0
          %s253 = sshll.u32 %s2, 4
          %s254 = int_to_ptr.hbm [resolvable:$true] %s253
          %s255 = sshll.u32 [#allocation9], 4
          %s256 = int_to_ptr.vmem [resolvable:$true] %s255
          %261 = dma.hbm_to_vmem [thread:$0]  %s254, 512, %s256, [#allocation8], 128, 128, 8
        $region16: #{tpu_custom_call.1} parent=11 // pred_fallthru
          _
        // Predicated region
        $region17: #{tpu_custom_call.1} parent=11 // pred_check
          %p262 = pneg %p135
        $region18: #{tpu_custom_call.1} parent=11 // pred_check_branch
          %264 = sbr.rel (%p262) target = $region20
        $region19: #{tpu_custom_call.1} parent=11 // pred_region
          _
        $region20: #{tpu_custom_call.1} parent=11 // pred_fallthru
          _
        // Predicated region
        $region21: #{tpu_custom_call.1} parent=11 // pred_check
          %p265 = pneg %p156
        $region22: #{tpu_custom_call.1} parent=11 // pred_check_branch
          %267 = sbr.rel (%p265) target = $region24
        $region23: #{tpu_custom_call.1} parent=11 // pred_region
          %269 = vsyncadd [#allocation11], 0
          %s270 = sshll.u32 %s4, 4
          %s271 = int_to_ptr.hbm [resolvable:$true] %s270
          %s272 = sshll.u32 [#allocation10], 4
          %s273 = int_to_ptr.vmem [resolvable:$true] %s272
          %278 = dma.hbm_to_vmem [thread:$0]  %s271, 512, %s273, [#allocation11], 128, 128, 8
        $region24: #{tpu_custom_call.1} parent=11 // pred_fallthru
          _
        // Predicated region
        $region25: #{tpu_custom_call.1} parent=11 // pred_check
          %p279 = pneg %p177
        $region26: #{tpu_custom_call.1} parent=11 // pred_check_branch
          %281 = sbr.rel (%p279) target = $region28
        $region27: #{tpu_custom_call.1} parent=11 // pred_region
          _
        $region28: #{tpu_custom_call.1} parent=11 // pred_fallthru
          _
      $region12: #{tpu_custom_call.1} parent=5 // pred_fallthru
        _
      %p282 = scmp.lt.s32.totalorder %s27, 4
      // Predicated region
      $region29: #{tpu_custom_call.1} parent=5 // pred_check
        %p283 = pneg %p282
      $region30: #{tpu_custom_call.1} parent=5 // pred_check_branch
        %285 = sbr.rel (%p283) target = $region32
      $region31: #{tpu_custom_call.1} parent=5 // pred_region
        // Predicated region
        $region33: #{tpu_custom_call.1} parent=31 // pred_check
          %p286 = pneg %p61
        $region34: #{tpu_custom_call.1} parent=31 // pred_check_branch
          %288 = sbr.rel (%p286) target = $region36
        $region35: #{tpu_custom_call.1} parent=31 // pred_region
          %s289 = sand.u32 %s51, 1
          %s290 = scalar_lea.sflag [#allocation5], %s289
          %s291 = sand.u32 %s51, 1
          %s292 = smul.addr %s291, 8
          %s293 = scalar_lea.vmem [#allocation4], %s292
          %295 = vsyncadd %s290, 0
          %s296 = smul.addr %s34, 2
          %s297 = sadd.s32 %s35, %s296
          %s298 = smul.addr %s297, 8
          %s299 = scalar_lea.hbm %s0, %s298
          %s301 = sshll.u32 %s299, 4
          %s302 = int_to_ptr.hbm [resolvable:$true] %s301
          %s303 = sshll.u32 %s293, 4
          %s304 = int_to_ptr.vmem [resolvable:$true] %s303
          %306 = dma.hbm_to_vmem [thread:$0]  %s302, 128, %s304, %s290
        $region36: #{tpu_custom_call.1} parent=31 // pred_fallthru
          _
        // Predicated region
        $region37: #{tpu_custom_call.1} parent=31 // pred_check
          %p307 = pneg %p87
        $region38: #{tpu_custom_call.1} parent=31 // pred_check_branch
          %309 = sbr.rel (%p307) target = $region40
        $region39: #{tpu_custom_call.1} parent=31 // pred_region
          %s310 = sand.u32 %s27, 1
          %s311 = scalar_lea.sflag [#allocation8], %s310
          %s312 = sand.u32 %s77, 1
          %s313 = smul.addr %s312, 16
          %s314 = scalar_lea.vmem [#allocation7], %s313
          %316 = vsyncadd %s311, 0
          %s317 = smul.addr %s34, 2
          %s318 = smul.addr %s317, 8
          %s319 = scalar_lea.hbm %s1, %s318
          %s320 = sshll.u32 %s319, 4
          %s321 = int_to_ptr.hbm [resolvable:$true] %s320
          %s322 = sshll.u32 %s314, 4
          %s323 = int_to_ptr.vmem [resolvable:$true] %s322
          %328 = dma.hbm_to_vmem [thread:$0]  %s321, 256, %s323, %s311, 128, 128, 8
        $region40: #{tpu_custom_call.1} parent=31 // pred_fallthru
          _
      $region32: #{tpu_custom_call.1} parent=5 // pred_fallthru
        _
      %p329 = scmp.le.s32.totalorder 1, %s27
      %p330 = scmp.lt.s32.totalorder %s27, 5
      %p331 = pnand %p329, %p330
      %p332 = pneg %p331
      // Predicated region
      $region41: #{tpu_custom_call.1} parent=5 // pred_check
        _
      $region42: #{tpu_custom_call.1} parent=5 // pred_check_branch
        %334 = sbr.rel (%p331) target = $region44
      $region43: #{tpu_custom_call.1} parent=5 // pred_region
        %s335 = ssub.s32 %s27, 1
        %s336 = sand.u32 %s54, 1
        %s337 = scalar_lea.sflag [#allocation5], %s336
        %s338 = sand.u32 %s54, 1
        %s339 = smul.addr %s338, 8
        %s340 = scalar_lea.vmem [#allocation4], %s339
        // Predicated region
        $region45: #{tpu_custom_call.1} parent=43 // pred_check
          %p341 = pneg %p67
        $region46: #{tpu_custom_call.1} parent=43 // pred_check_branch
          %343 = sbr.rel (%p341) target = $region48
        $region47: #{tpu_custom_call.1} parent=43 // pred_region
          %345 = dma.done %s337, 128
        $region48: #{tpu_custom_call.1} parent=43 // pred_fallthru
          _
        %s346 = sand.u32 %s32, 1
        %s347 = scalar_lea.sflag [#allocation8], %s346
        %s348 = sand.u32 %s80, 1
        %s349 = smul.addr %s348, 16
        %s350 = scalar_lea.vmem [#allocation7], %s349
        // Predicated region
        $region49: #{tpu_custom_call.1} parent=43 // pred_check
          %p351 = pneg %p93
        $region50: #{tpu_custom_call.1} parent=43 // pred_check_branch
          %353 = sbr.rel (%p351) target = $region52
        $region51: #{tpu_custom_call.1} parent=43 // pred_region
          %355 = dma.done %s347, 256
        $region52: #{tpu_custom_call.1} parent=43 // pred_fallthru
          _
        // Predicated region
        $region53: #{tpu_custom_call.1} parent=43 // pred_check
          %p356 = pneg %p114
        $region54: #{tpu_custom_call.1} parent=43 // pred_check_branch
          %358 = sbr.rel (%p356) target = $region56
        $region55: #{tpu_custom_call.1} parent=43 // pred_region
          %360 = dma.done [#allocation8], 512
        $region56: #{tpu_custom_call.1} parent=43 // pred_fallthru
          _
        // Predicated region
        $region57: #{tpu_custom_call.1} parent=43 // pred_check
          %p361 = pneg %p156
        $region58: #{tpu_custom_call.1} parent=43 // pred_check_branch
          %363 = sbr.rel (%p361) target = $region60
        $region59: #{tpu_custom_call.1} parent=43 // pred_region
          %365 = dma.done [#allocation11], 512
        $region60: #{tpu_custom_call.1} parent=43 // pred_fallthru
          _
        %s366 = sand.u32 %s54, 1
        %s367 = scalar_lea.sflag [#allocation5], %s366
        %s368 = sand.u32 %s54, 1
        %s369 = smul.addr %s368, 8
        %s370 = scalar_lea.vmem [#allocation4], %s369
        %p371 = pneg %p67
        %p372 = pneg %p64
        %s373 = sand.u32 %s32, 1
        %s374 = scalar_lea.sflag [#allocation8], %s373
        %s375 = sand.u32 %s80, 1
        %s376 = smul.addr %s375, 16
        %s377 = scalar_lea.vmem [#allocation7], %s376
        %p378 = pneg %p93
        %p379 = pneg %p90
        %p380 = pneg %p114
        %p381 = pneg %p111
        %p382 = pneg %p135
        %p383 = pneg %p132
        %p384 = pneg %p156
        %p385 = pneg %p153
        %p386 = pneg %p177
        %p387 = pneg %p174
        %p388 = pneg %p205
        %p389 = pneg %p202
        %s390 = sand.u32 %s192, 1
        %s391 = scalar_lea.sflag [#allocation6], %s390
        %s392 = sand.u32 %s192, 1
        %s393 = smul.addr %s392, 8
        %s394 = scalar_lea.vmem [#allocation12], %s393
        %p395 = pneg %p233
        %p396 = pneg %p230
        %s397 = sand.u32 %s220, 1
        %s398 = scalar_lea.sflag [#allocation14], %s397
        %s399 = sand.u32 %s220, 1
        %s400 = smul.addr %s399, 32
        %s401 = scalar_lea.vmem [#allocation13], %s400
        %v402 = vld [vmem:[%s340] sm:$0xff]
        %p403 = scmp.eq.s32.totalorder %s37, 0
        // Predicated region
        $region61: #{tpu_custom_call.1} parent=43 // pred_check
          %p404 = pneg %p403
        $region62: #{tpu_custom_call.1} parent=43 // pred_check_branch
          %406 = sbr.rel (%p404) target = $region64
        $region63: #{tpu_custom_call.1} parent=43 // pred_region
          %v407 = vld [vmem:[%s350] sm:$0xff]
          %v408 = vld [vmem:[%s350 + $0x8] sm:$0xff]
          %v409 = vld [vmem:[#allocation10] sm:$0xff]
          %v410 = vld [vmem:[#allocation10 + $0x8] sm:$0xff]
          %v411 = vld [vmem:[#allocation10 + $0x10] sm:$0xff]
          %v412 = vld [vmem:[#allocation10 + $0x18] sm:$0xff]
          %v413 = vld [vmem:[%s5] sm:$0x1]
          %v415 = vperm.slane %v413, 0
          %vm417 = vcmask 261120
          %v419 = vsel %vm417, %v407, 0
          %v422 = vsel %vm417, %v408, 0
          %424 = vmatpush.msra.mxu0 0.0
          %425 = vmatpush.msra.mxu0 0.0
          %426 = vmatpush.msra.mxu0 0.0
          %427 = vmatpush.msra.mxu0 0.0
          %428 = vmatpush.msra.mxu0 0.0
          %429 = vmatpush.msra.mxu0 0.0
          %430 = vmatpush.msra.mxu0 0.0
          %431 = vmatpush.msra.mxu0 0.0
          %432 = vmatpush.msra.mxu0 0.0
          %433 = vmatpush.msra.mxu0 0.0
          %434 = vmatpush.msra.mxu0 0.0
          %435 = vmatpush.msra.mxu0 0.0
          %436 = vmatpush.msra.mxu0 %v412
          %437 = vmatpush.msra.mxu0 %v411
          %438 = vmatpush.msra.mxu0 %v410
          %439 = vmatpush.msra.mxu0 %v409
          %440 = vmatmul.f32.gmra.mxu0 %v419
          %v441 = vpop.f32.mrf.mxu0
          %v442 = vadd.f32 %v415, %v441
          %443 = vmatmul.f32.gmra.mxu0 %v422
          %v444 = vpop.f32.mrf.mxu0
          %v445 = vadd.f32 %v415, %v444
          %446 = vdwg.mxu0
          %vm447 = vcmask 523264
          %448 = vst.msk [vmem:[#allocation2] sm:$0xff] %vm447, %v442
          %449 = vst.msk [vmem:[#allocation2 + $0x8] sm:$0xff] %vm447, %v445
          %v450 = vand.u32 2147483647, %v407
          %v451 = vand.u32 2147483647, %v408
          %v452 = vsel %vm417, %v450, 0.0
          %453 = vadd.xlane.f32.xlu0 %v452
          %v454 = vpop.xlane.xlu0 %453
          %v455 = vsel %vm417, %v451, 0.0
          %456 = vadd.xlane.f32.xlu0 %v455
          %v457 = vpop.xlane.xlu0 %456
          %vm458 = vcmp.eq.f32.partialorder %v454, 0.0
          %vm459 = vcmp.eq.f32.partialorder %v457, 0.0
          %v460 = vsel %vm458, -inf, 0.0
          %v461 = vsel %vm459, -inf, 0.0
          %v464 = vlaneseq
          %v465 = vand.u32 %v464, 127
          %v466 = vperm.slane %v460, %v465
          %v467 = vadd.s32 %v465, 4294967288
          %v468 = vperm.slane %v461, %v467
          %vm469 = vcmask 130112
          %v470 = vsel %vm469, %v468, %v466
          %vm472 = vcmask 122880
          %473 = vst.msk [vmem:[#allocation3] sm:$0x1] %vm472, %v470
        $region64: #{tpu_custom_call.1} parent=43 // pred_fallthru
          _
        %v474 = vld [vmem:[#allocation9] sm:$0xff]
        %v475 = vld [vmem:[#allocation9 + $0x8] sm:$0xff]
        %v476 = vld [vmem:[#allocation9 + $0x10] sm:$0xff]
        %v477 = vld [vmem:[#allocation9 + $0x18] sm:$0xff]
        %v478 = vld [vmem:[%s3] sm:$0x1]
        %v480 = vperm.slane %v478, 0
        %vm482 = vcmask 261120
        %v484 = vsel %vm482, %v402, 0
        %486 = vmatpush.msra.mxu0 0.0
        %487 = vmatpush.msra.mxu0 0.0
        %488 = vmatpush.msra.mxu0 0.0
        %489 = vmatpush.msra.mxu0 0.0
        %490 = vmatpush.msra.mxu0 0.0
        %491 = vmatpush.msra.mxu0 0.0
        %492 = vmatpush.msra.mxu0 0.0
        %493 = vmatpush.msra.mxu0 0.0
        %494 = vmatpush.msra.mxu0 0.0
        %495 = vmatpush.msra.mxu0 0.0
        %496 = vmatpush.msra.mxu0 0.0
        %497 = vmatpush.msra.mxu0 0.0
        %498 = vmatpush.msra.mxu0 %v477
        %499 = vmatpush.msra.mxu0 %v476
        %500 = vmatpush.msra.mxu0 %v475
        %501 = vmatpush.msra.mxu0 %v474
        %502 = vmatmul.f32.gmra.mxu0 %v484
        %v503 = vpop.f32.mrf.mxu0
        %v504 = vadd.f32 %v480, %v503
        %505 = vdwg.mxu0
        %v506 = vld [vmem:[#allocation2] sm:$0xff]
        %v507 = vld [vmem:[#allocation2 + $0x8] sm:$0xff]
        %v508 = vld [vmem:[#allocation3] sm:$0x1]
        %v509 = vand.u32 2147483647, %v402
        %v510 = vsel %vm482, %v509, 0.0
        %511 = vadd.xlane.f32.xlu0 %v510
        %v512 = vpop.xlane.xlu0 %511
        %vm513 = vcmp.eq.f32.partialorder %v512, 0.0
        %v514 = vsel %vm513, 0.0, 1.0
        %v516 = vperm.slane %v508, 0
        %vm518 = vcmask 64512
        %v520 = vsel %vm518, %v504, 0
        %v523 = vsel %vm518, %v506, 0
        %v526 = vsel %vm518, %v507, 0
        %528 = vmatpush.xpose.msra.mxu0 0.0
        %529 = vmatpush.xpose.msra.mxu0 0.0
        %530 = vmatpush.xpose.msra.mxu0 0.0
        %531 = vmatpush.xpose.msra.mxu0 0.0
        %532 = vmatpush.xpose.msra.mxu0 0.0
        %533 = vmatpush.xpose.msra.mxu0 0.0
        %534 = vmatpush.xpose.msra.mxu0 0.0
        %535 = vmatpush.xpose.msra.mxu0 0.0
        %536 = vmatpush.xpose.msra.mxu0 0.0
        %537 = vmatpush.xpose.msra.mxu0 0.0
        %538 = vmatpush.xpose.msra.mxu0 0.0
        %539 = vmatpush.xpose.msra.mxu0 0.0
        %540 = vmatpush.xpose.msra.mxu0 0.0
        %541 = vmatpush.xpose.msra.mxu0 0.0
        %542 = vmatpush.xpose.msra.mxu0 %v526
        %543 = vmatpush.xpose.msra.mxu0 %v523
        %544 = vmatmul.f32.gmra.mxu0 %v520
        %v545 = vpop.f32.mrf.mxu0
        %v546 = vadd.f32 %v516, %v545
        %547 = vdwg.mxu0
        %vm548 = vcmask 130048
        %v549 = vsel %vm548, %v546, -inf
        %550 = vmax.xlane.f32.xlu0 %v549
        %v551 = vpop.xlane.xlu0 %550
        %vm552 = vcmp.gt.f32.partialorder %v551, -inf
        %v553 = vsel %vm552, %v551, 0.0
        %v554 = vsub.f32 %v546, %v553
        %v555 = vmul.f32 %v554, 1.442695
        %v556 = vpow.pop %v555
        %v557 = vsel %vm548, %v556, 0.0
        %558 = vadd.xlane.f32.xlu0 %v557
        %v559 = vpop.xlane.xlu0 %558
        %vm560 = vcmp.gt.f32.partialorder %v559, 0.0
        %vm561 = vmand %vm552, %vm560
        %v562 = vrcp.pop %v559
        %v563 = vmul.f32 %v556, %v562
        %v564 = vsel %vm561, 1, 0
        %vm565 = vcmp.eq.s32.totalorder %v564, 1
        %v566 = vsel %vm565, %v563, 0.0
        %v567 = vmul.f32 %v566, %v514
        %568 = vst.msk [vmem:[%s401] sm:$0xff] %vm548, %v567
        %569 = vrot.lane.b32.xlu0 %v506, 96
        %v570 = vpop.permute.xlu0 %569
        %571 = vrot.lane.b32.xlu0 %v507, 96
        %v572 = vpop.permute.xlu0 %571
        %v576 = vsel %vm548, %v567, 0
        %578 = vmatpush.msra.mxu0 0.0
        %579 = vmatpush.msra.mxu0 0.0
        %580 = vmatpush.msra.mxu0 0.0
        %581 = vmatpush.msra.mxu0 0.0
        %582 = vmatpush.msra.mxu0 0.0
        %583 = vmatpush.msra.mxu0 0.0
        %584 = vmatpush.msra.mxu0 0.0
        %585 = vmatpush.msra.mxu0 0.0
        %586 = vmatpush.msra.mxu0 0.0
        %587 = vmatpush.msra.mxu0 0.0
        %588 = vmatpush.msra.mxu0 0.0
        %589 = vmatpush.msra.mxu0 0.0
        %590 = vmatpush.msra.mxu0 0.0
        %591 = vmatpush.msra.mxu0 0.0
        %592 = vmatpush.msra.mxu0 %v572
        %593 = vmatpush.msra.mxu0 %v570
        %594 = vmatmul.f32.gmra.mxu0 %v576
        %v595 = vpop.f32.mrf.mxu0
        %v596 = vadd.f32 0.0, %v595
        %597 = vdwg.mxu0
        %598 = vrot.lane.b32.xlu0 %v504, 120
        %v599 = vpop.permute.xlu0 %598
        %600 = vrot.lane.b32.xlu0 %v506, 120
        %v601 = vpop.permute.xlu0 %600
        %602 = vrot.lane.b32.xlu0 %v507, 120
        %v603 = vpop.permute.xlu0 %602
        %v604 = vsel %vm518, %v599, 0
        %v606 = vsel %vm518, %v601, 0
        %v608 = vsel %vm518, %v603, 0
        %610 = vmatpush.xpose.msra.mxu0 0.0
        %611 = vmatpush.xpose.msra.mxu0 0.0
        %612 = vmatpush.xpose.msra.mxu0 0.0
        %613 = vmatpush.xpose.msra.mxu0 0.0
        %614 = vmatpush.xpose.msra.mxu0 0.0
        %615 = vmatpush.xpose.msra.mxu0 0.0
        %616 = vmatpush.xpose.msra.mxu0 0.0
        %617 = vmatpush.xpose.msra.mxu0 0.0
        %618 = vmatpush.xpose.msra.mxu0 0.0
        %619 = vmatpush.xpose.msra.mxu0 0.0
        %620 = vmatpush.xpose.msra.mxu0 0.0
        %621 = vmatpush.xpose.msra.mxu0 0.0
        %622 = vmatpush.xpose.msra.mxu0 0.0
        %623 = vmatpush.xpose.msra.mxu0 0.0
        %624 = vmatpush.xpose.msra.mxu0 %v608
        %625 = vmatpush.xpose.msra.mxu0 %v606
        %626 = vmatmul.f32.gmra.mxu0 %v604
        %v627 = vpop.f32.mrf.mxu0
        %v628 = vadd.f32 %v516, %v627
        %629 = vdwg.mxu0
        %v630 = vsel %vm548, %v628, -inf
        %631 = vmax.xlane.f32.xlu0 %v630
        %v632 = vpop.xlane.xlu0 %631
        %vm633 = vcmp.gt.f32.partialorder %v632, -inf
        %v634 = vsel %vm633, %v632, 0.0
        %v635 = vsub.f32 %v628, %v634
        %v636 = vmul.f32 %v635, 1.442695
        %v637 = vpow.pop %v636
        %v638 = vsel %vm548, %v637, 0.0
        %639 = vadd.xlane.f32.xlu0 %v638
        %v640 = vpop.xlane.xlu0 %639
        %vm641 = vcmp.gt.f32.partialorder %v640, 0.0
        %vm642 = vmand %vm633, %vm641
        %v643 = vrcp.pop %v640
        %v644 = vmul.f32 %v637, %v643
        %v645 = vsel %vm642, 1, 0
        %vm646 = vcmp.eq.s32.totalorder %v645, 1
        %v647 = vsel %vm646, %v644, 0.0
        %v648 = vmul.f32 %v647, %v514
        %s649 = scalar_lea.vmem %s401, 8 [#allocation13]
        %650 = vst.msk [vmem:[%s649] sm:$0xff] %vm548, %v648
        %651 = vrot.lane.b32.xlu0 %v506, 88
        %v652 = vpop.permute.xlu0 %651
        %653 = vrot.lane.b32.xlu0 %v507, 88
        %v654 = vpop.permute.xlu0 %653
        %v658 = vsel %vm548, %v648, 0
        %660 = vmatpush.msra.mxu0 0.0
        %661 = vmatpush.msra.mxu0 0.0
        %662 = vmatpush.msra.mxu0 0.0
        %663 = vmatpush.msra.mxu0 0.0
        %664 = vmatpush.msra.mxu0 0.0
        %665 = vmatpush.msra.mxu0 0.0
        %666 = vmatpush.msra.mxu0 0.0
        %667 = vmatpush.msra.mxu0 0.0
        %668 = vmatpush.msra.mxu0 0.0
        %669 = vmatpush.msra.mxu0 0.0
        %670 = vmatpush.msra.mxu0 0.0
        %671 = vmatpush.msra.mxu0 0.0
        %672 = vmatpush.msra.mxu0 0.0
        %673 = vmatpush.msra.mxu0 0.0
        %674 = vmatpush.msra.mxu0 %v654
        %675 = vmatpush.msra.mxu0 %v652
        %676 = vmatmul.f32.gmra.mxu0 %v658
        %v677 = vpop.f32.mrf.mxu0
        %v678 = vadd.f32 0.0, %v677
        %679 = vdwg.mxu0
        %680 = vrot.lane.b32.xlu0 %v504, 112
        %v681 = vpop.permute.xlu0 %680
        %682 = vrot.lane.b32.xlu0 %v506, 112
        %v683 = vpop.permute.xlu0 %682
        %684 = vrot.lane.b32.xlu0 %v507, 112
        %v685 = vpop.permute.xlu0 %684
        %v686 = vsel %vm518, %v681, 0
        %v688 = vsel %vm518, %v683, 0
        %v690 = vsel %vm518, %v685, 0
        %692 = vmatpush.xpose.msra.mxu0 0.0
        %693 = vmatpush.xpose.msra.mxu0 0.0
        %694 = vmatpush.xpose.msra.mxu0 0.0
        %695 = vmatpush.xpose.msra.mxu0 0.0
        %696 = vmatpush.xpose.msra.mxu0 0.0
        %697 = vmatpush.xpose.msra.mxu0 0.0
        %698 = vmatpush.xpose.msra.mxu0 0.0
        %699 = vmatpush.xpose.msra.mxu0 0.0
        %700 = vmatpush.xpose.msra.mxu0 0.0
        %701 = vmatpush.xpose.msra.mxu0 0.0
        %702 = vmatpush.xpose.msra.mxu0 0.0
        %703 = vmatpush.xpose.msra.mxu0 0.0
        %704 = vmatpush.xpose.msra.mxu0 0.0
        %705 = vmatpush.xpose.msra.mxu0 0.0
        %706 = vmatpush.xpose.msra.mxu0 %v690
        %707 = vmatpush.xpose.msra.mxu0 %v688
        %708 = vmatmul.f32.gmra.mxu0 %v686
        %v709 = vpop.f32.mrf.mxu0
        %v710 = vadd.f32 %v516, %v709
        %711 = vdwg.mxu0
        %v712 = vsel %vm548, %v710, -inf
        %713 = vmax.xlane.f32.xlu0 %v712
        %v714 = vpop.xlane.xlu0 %713
        %vm715 = vcmp.gt.f32.partialorder %v714, -inf
        %v716 = vsel %vm715, %v714, 0.0
        %v717 = vsub.f32 %v710, %v716
        %v718 = vmul.f32 %v717, 1.442695
        %v719 = vpow.pop %v718
        %v720 = vsel %vm548, %v719, 0.0
        %721 = vadd.xlane.f32.xlu0 %v720
        %v722 = vpop.xlane.xlu0 %721
        %vm723 = vcmp.gt.f32.partialorder %v722, 0.0
        %vm724 = vmand %vm715, %vm723
        %v725 = vrcp.pop %v722
        %v726 = vmul.f32 %v719, %v725
        %v727 = vsel %vm724, 1, 0
        %vm728 = vcmp.eq.s32.totalorder %v727, 1
        %v729 = vsel %vm728, %v726, 0.0
        %v730 = vmul.f32 %v729, %v514
        %s731 = scalar_lea.vmem %s401, 16 [#allocation13]
        %732 = vst.msk [vmem:[%s731] sm:$0xff] %vm548, %v730
        %733 = vrot.lane.b32.xlu0 %v506, 80
        %v734 = vpop.permute.xlu0 %733
        %735 = vrot.lane.b32.xlu0 %v507, 80
        %v736 = vpop.permute.xlu0 %735
        %v740 = vsel %vm548, %v730, 0
        %742 = vmatpush.msra.mxu0 0.0
        %743 = vmatpush.msra.mxu0 0.0
        %744 = vmatpush.msra.mxu0 0.0
        %745 = vmatpush.msra.mxu0 0.0
        %746 = vmatpush.msra.mxu0 0.0
        %747 = vmatpush.msra.mxu0 0.0
        %748 = vmatpush.msra.mxu0 0.0
        %749 = vmatpush.msra.mxu0 0.0
        %750 = vmatpush.msra.mxu0 0.0
        %751 = vmatpush.msra.mxu0 0.0
        %752 = vmatpush.msra.mxu0 0.0
        %753 = vmatpush.msra.mxu0 0.0
        %754 = vmatpush.msra.mxu0 0.0
        %755 = vmatpush.msra.mxu0 0.0
        %756 = vmatpush.msra.mxu0 %v736
        %757 = vmatpush.msra.mxu0 %v734
        %758 = vmatmul.f32.gmra.mxu0 %v740
        %v759 = vpop.f32.mrf.mxu0
        %v760 = vadd.f32 0.0, %v759
        %761 = vdwg.mxu0
        %762 = vrot.lane.b32.xlu0 %v504, 104
        %v763 = vpop.permute.xlu0 %762
        %764 = vrot.lane.b32.xlu0 %v506, 104
        %v765 = vpop.permute.xlu0 %764
        %766 = vrot.lane.b32.xlu0 %v507, 104
        %v767 = vpop.permute.xlu0 %766
        %v768 = vsel %vm518, %v763, 0
        %v770 = vsel %vm518, %v765, 0
        %v772 = vsel %vm518, %v767, 0
        %774 = vmatpush.xpose.msra.mxu0 0.0
        %775 = vmatpush.xpose.msra.mxu0 0.0
        %776 = vmatpush.xpose.msra.mxu0 0.0
        %777 = vmatpush.xpose.msra.mxu0 0.0
        %778 = vmatpush.xpose.msra.mxu0 0.0
        %779 = vmatpush.xpose.msra.mxu0 0.0
        %780 = vmatpush.xpose.msra.mxu0 0.0
        %781 = vmatpush.xpose.msra.mxu0 0.0
        %782 = vmatpush.xpose.msra.mxu0 0.0
        %783 = vmatpush.xpose.msra.mxu0 0.0
        %784 = vmatpush.xpose.msra.mxu0 0.0
        %785 = vmatpush.xpose.msra.mxu0 0.0
        %786 = vmatpush.xpose.msra.mxu0 0.0
        %787 = vmatpush.xpose.msra.mxu0 0.0
        %788 = vmatpush.xpose.msra.mxu0 %v772
        %789 = vmatpush.xpose.msra.mxu0 %v770
        %790 = vmatmul.f32.gmra.mxu0 %v768
        %v791 = vpop.f32.mrf.mxu0
        %v792 = vadd.f32 %v516, %v791
        %793 = vdwg.mxu0
        %v794 = vsel %vm548, %v792, -inf
        %795 = vmax.xlane.f32.xlu0 %v794
        %v796 = vpop.xlane.xlu0 %795
        %vm797 = vcmp.gt.f32.partialorder %v796, -inf
        %v798 = vsel %vm797, %v796, 0.0
        %v799 = vsub.f32 %v792, %v798
        %v800 = vmul.f32 %v799, 1.442695
        %v801 = vpow.pop %v800
        %v802 = vsel %vm548, %v801, 0.0
        %803 = vadd.xlane.f32.xlu0 %v802
        %v804 = vpop.xlane.xlu0 %803
        %vm805 = vcmp.gt.f32.partialorder %v804, 0.0
        %vm806 = vmand %vm797, %vm805
        %v807 = vrcp.pop %v804
        %v808 = vmul.f32 %v801, %v807
        %v809 = vsel %vm806, 1, 0
        %vm810 = vcmp.eq.s32.totalorder %v809, 1
        %v811 = vsel %vm810, %v808, 0.0
        %v812 = vmul.f32 %v811, %v514
        %s813 = scalar_lea.vmem %s401, 24 [#allocation13]
        %814 = vst.msk [vmem:[%s813] sm:$0xff] %vm548, %v812
        %815 = vrot.lane.b32.xlu0 %v506, 72
        %v816 = vpop.permute.xlu0 %815
        %817 = vrot.lane.b32.xlu0 %v507, 72
        %v818 = vpop.permute.xlu0 %817
        %v822 = vsel %vm548, %v812, 0
        %824 = vmatpush.msra.mxu0 0.0
        %825 = vmatpush.msra.mxu0 0.0
        %826 = vmatpush.msra.mxu0 0.0
        %827 = vmatpush.msra.mxu0 0.0
        %828 = vmatpush.msra.mxu0 0.0
        %829 = vmatpush.msra.mxu0 0.0
        %830 = vmatpush.msra.mxu0 0.0
        %831 = vmatpush.msra.mxu0 0.0
        %832 = vmatpush.msra.mxu0 0.0
        %833 = vmatpush.msra.mxu0 0.0
        %834 = vmatpush.msra.mxu0 0.0
        %835 = vmatpush.msra.mxu0 0.0
        %836 = vmatpush.msra.mxu0 0.0
        %837 = vmatpush.msra.mxu0 0.0
        %838 = vmatpush.msra.mxu0 %v818
        %839 = vmatpush.msra.mxu0 %v816
        %840 = vmatmul.f32.gmra.mxu0 %v822
        %v841 = vpop.f32.mrf.mxu0
        %v842 = vadd.f32 0.0, %v841
        %843 = vdwg.mxu0
        %845 = vrot.lane.b32.xlu0 %v678, 8
        %v846 = vpop.permute.xlu0 %845
        %849 = vrot.lane.b32.xlu0 %v760, 16
        %v850 = vpop.permute.xlu0 %849
        %853 = vrot.lane.b32.xlu0 %v842, 24
        %v854 = vpop.permute.xlu0 %853
        %v856 = vsel %vm518, %v596, %v846
        %v857 = vsel %vm548, %v856, %v850
        %vm858 = vcmask 195584
        %v859 = vsel %vm858, %v857, %v854
        %860 = vst.msk [vmem:[%s394] sm:$0xff] %vm482, %v859
        %s861 = sand.u32 %s192, 1
        %s862 = scalar_lea.sflag [#allocation6], %s861
        %s863 = sand.u32 %s192, 1
        %s864 = smul.addr %s863, 8
        %s865 = scalar_lea.vmem [#allocation12], %s864
        %s866 = sand.u32 %s220, 1
        %s867 = scalar_lea.sflag [#allocation14], %s866
        %s868 = sand.u32 %s220, 1
        %s869 = smul.addr %s868, 32
        %s870 = scalar_lea.vmem [#allocation13], %s869
        // Predicated region
        $region65: #{tpu_custom_call.1} parent=43 // pred_check
          %p871 = pneg %p202
        $region66: #{tpu_custom_call.1} parent=43 // pred_check_branch
          %873 = sbr.rel (%p871) target = $region68
        $region67: #{tpu_custom_call.1} parent=43 // pred_region
          %875 = vsyncadd %s862, 0
          %s876 = smul.addr %s36, 2
          %s877 = sadd.s32 %s37, %s876
          %s878 = smul.addr %s877, 8
          %s879 = scalar_lea.hbm %s6, %s878
          %s881 = sshll.u32 %s865, 4
          %s882 = int_to_ptr.vmem [resolvable:$true] %s881
          %s883 = sshll.u32 %s879, 4
          %s884 = int_to_ptr.hbm [resolvable:$true] %s883
          %886 = dma.vmem_to_hbm [thread:$0]  %s882, 128, %s884, %s862
        $region68: #{tpu_custom_call.1} parent=43 // pred_fallthru
          _
        // Predicated region
        $region69: #{tpu_custom_call.1} parent=43 // pred_check
          %p887 = pneg %p230
        $region70: #{tpu_custom_call.1} parent=43 // pred_check_branch
          %889 = sbr.rel (%p887) target = $region72
        $region71: #{tpu_custom_call.1} parent=43 // pred_region
          %891 = vsyncadd %s867, 0
          %s892 = smul.addr %s36, 8
          %s893 = sadd.s32 %s37, %s892
          %s894 = smul.addr %s893, 8
          %s895 = scalar_lea.hbm %s7, %s894
          %s896 = sshll.u32 %s870, 4
          %s897 = int_to_ptr.vmem [resolvable:$true] %s896
          %s898 = sshll.u32 %s895, 4
          %s899 = int_to_ptr.hbm [resolvable:$true] %s898
          %904 = dma.vmem_to_hbm [thread:$0]  %s897, 512, %s899, %s867, 128, 256, 8
        $region72: #{tpu_custom_call.1} parent=43 // pred_fallthru
          _
      $region44: #{tpu_custom_call.1} parent=5 // pred_fallthru
        _
      %p905 = scmp.le.s32.totalorder 2, %s27
      // Predicated region
      $region73: #{tpu_custom_call.1} parent=5 // pred_check
        %p906 = pneg %p905
      $region74: #{tpu_custom_call.1} parent=5 // pred_check_branch
        %908 = sbr.rel (%p906) target = $region76
      $region75: #{tpu_custom_call.1} parent=5 // pred_region
        %s909 = ssub.s32 %s27, 2
        // Predicated region
        $region77: #{tpu_custom_call.1} parent=75 // pred_check
          %p910 = pneg %p208
        $region78: #{tpu_custom_call.1} parent=75 // pred_check_branch
          %912 = sbr.rel (%p910) target = $region80
        $region79: #{tpu_custom_call.1} parent=75 // pred_region
          %s913 = sand.u32 %s193, 1
          %s914 = scalar_lea.sflag [#allocation6], %s913
          %s915 = sand.u32 %s193, 1
          %s916 = smul.addr %s915, 8
          %s917 = scalar_lea.vmem [#allocation12], %s916
          %919 = dma.done %s914, 128
        $region80: #{tpu_custom_call.1} parent=75 // pred_fallthru
          _
        // Predicated region
        $region81: #{tpu_custom_call.1} parent=75 // pred_check
          %p920 = pneg %p236
        $region82: #{tpu_custom_call.1} parent=75 // pred_check_branch
          %922 = sbr.rel (%p920) target = $region84
        $region83: #{tpu_custom_call.1} parent=75 // pred_region
          %s923 = sand.u32 %s221, 1
          %s924 = scalar_lea.sflag [#allocation14], %s923
          %s925 = sand.u32 %s221, 1
          %s926 = smul.addr %s925, 32
          %s927 = scalar_lea.vmem [#allocation13], %s926
          %929 = dma.done %s924, 512
        $region84: #{tpu_custom_call.1} parent=75 // pred_fallthru
          _
      $region76: #{tpu_custom_call.1} parent=5 // pred_fallthru
        _
    $region6: #{tpu_custom_call.1} parent=1 // loop_footer
      %s31 = sadd.s32 1, %s27
    $region7: #{tpu_custom_call.1} parent=1 // loop_footer_branch
      %26 = sbr.rel target = $region3
    $region8: #{tpu_custom_call.1} parent=1 // loop_exit
      _
    %930 = vsyncpa [#allocation5], 1
    %s931 = scalar_lea.sflag [#allocation5], 1
    %932 = vsyncpa %s931, 1
    %933 = vsyncpa [#allocation8], 1
    %s934 = scalar_lea.sflag [#allocation8], 1
    %935 = vsyncpa %s934, 1
    %936 = vsyncpa [#allocation11], 1
    %937 = vsyncpa [#allocation6], 1
    %s938 = scalar_lea.sflag [#allocation6], 1
    %939 = vsyncpa %s938, 1
    %940 = vsyncpa [#allocation14], 1
    %s941 = scalar_lea.sflag [#allocation14], 1
    %942 = vsyncpa %s941, 1

</llo_original>
